<compile_context>
chip_gen: v7x
topology: tpu7x:2x2x1
jax: 0.10.0
libtpu: 0.0.40
codegen_flags: <defaults>
</compile_context>

<pallas_src>
import jax
import jax.numpy as jnp
from jax.experimental import pallas as pl
from jax.experimental.pallas import tpu as pltpu


def _round_up(x, m):
    return (x + m - 1) // m * m


def _vmem_capacity_bytes():
    try:
        info = pltpu.get_tpu_info()
        cap = getattr(info, "vmem_capacity_bytes", None)
        if cap:
            return int(cap)
    except Exception:
        pass
    return 64 << 20  # conservative per-TensorCore default (v7x)


def wave_filters_kernel(x_ref, w_ref, v_ref, filt_ref, out_ref):
    # x_ref:    (T_pad, col_tile)   time x (batch*channels) column tile (zero-padded)
    # w_ref:    (2K_pad, T_pad)     stacked [Wr; Wi] ortho rfft matrix (zero-padded)
    # v_ref:    (T_tile, 2K_pad)    row tile of stacked [Vr | Vi] ortho irfft matrix
    # filt_ref: (2K_pad, col_tile)  Gaussian filter, re/im stacked, period-C pattern
    # out_ref:  (T_tile, col_tile)
    spec = jnp.dot(w_ref[...], x_ref[...],
                   preferred_element_type=jnp.float32)          # (2K_pad, Nt) = [Fr; Fi]
    spec = spec * filt_ref[...]                                  # filtered spectrum
    out_ref[...] = jnp.dot(v_ref[...], spec,
                           preferred_element_type=jnp.float32
                           ).astype(out_ref.dtype)               # (T_tile, Nt)


def make_dft_matrices(T, T_pad, K_pad):
    """Zero-padded real/imag DFT matrices reproducing torch rfft/irfft(norm='ortho')."""
    K = T // 2 + 1
    n = jnp.arange(T, dtype=jnp.float32)
    k = jnp.arange(K, dtype=jnp.float32)
    scale = 1.0 / jnp.sqrt(jnp.float32(T))                  # ortho norm

    ang = 2.0 * jnp.pi * k[:, None] * n[None, :] / T        # (K, T)
    wr = jnp.cos(ang) * scale                               # Re exp(-i ang)
    wi = -jnp.sin(ang) * scale                              # Im exp(-i ang)

    # irfft weighting: DC (and Nyquist for even T) counted once, other bins twice.
    wgt = jnp.full((K,), 2.0, dtype=jnp.float32).at[0].set(1.0)
    if T % 2 == 0:
        wgt = wgt.at[K - 1].set(1.0)
    vr = (jnp.cos(ang) * scale * wgt[:, None]).T            # (T, K)
    vi = (-jnp.sin(ang) * scale * wgt[:, None]).T           # (T, K)

    W = jnp.zeros((2 * K_pad, T_pad), jnp.float32)
    W = W.at[:K, :T].set(wr).at[K_pad:K_pad + K, :T].set(wi)
    V = jnp.zeros((T_pad, 2 * K_pad), jnp.float32)
    V = V.at[:T, :K].set(vr).at[:T, K_pad:K_pad + K].set(vi)
    return W, V


def wave_filters_forward(x, f_c, f_b):
    """x: (B, T, C) float32;  f_c, f_b: (1, 1, scale) with scale >= C."""
    B, T, C = x.shape
    K = T // 2 + 1
    N = B * C

    # --- aligned / padded sizes -------------------------------------------
    K_pad = _round_up(K, 8)          # sublane-aligned rfft bins (per re/im half)
    T_pad = _round_up(T, 8)
    N_pad = _round_up(N, 128)        # lane-dense column slab

    vmem_cap = _vmem_capacity_bytes()
    budget = max(vmem_cap - (8 << 20), 16 << 20)

    def vmem_needed(ct, tt):
        # Conservative (everything double-buffered) + spectrum intermediate.
        return 4 * (2 * (2 * K_pad * T_pad)      # W
                    + 2 * (tt * 2 * K_pad)       # V
                    + 2 * (T_pad * ct)           # x tile
                    + 2 * (2 * K_pad * ct)       # filter tile
                    + 2 * (tt * ct)              # out tile
                    + 2 * (2 * K_pad * ct))      # spec intermediate

    # Column tile: largest of {512, 256, 128} that divides N_pad and fits VMEM.
    col_tile = 128
    for cand in (512, 256):
        if cand <= N_pad and N_pad % cand == 0 and vmem_needed(cand, T_pad) <= budget:
            col_tile = cand
            break
    n_col_tiles = N_pad // col_tile

    # v7x has 2 TensorCores: if only one column tile, split output time rows
    # into two parallel tiles (spec is recomputed per row tile; cheap for small T).
    if n_col_tiles < 2 and T_pad >= 16:
        n_row_tiles = 2
        T_tile = _round_up((T_pad + 1) // 2, 8)
        T_pad = n_row_tiles * T_tile
    else:
        n_row_tiles = 1
        T_tile = T_pad

    W, V = make_dft_matrices(T, T_pad, K_pad)

    # Gaussian filter: batch-invariant -> computed once here (hoisted out of kernel).
    omega = jnp.linspace(0.0, 0.5, K, dtype=jnp.float32).reshape(K, 1)
    fc = f_c.reshape(1, -1)[:, :C].astype(jnp.float32)        # filters[:, :, :in_channels]
    fb = f_b.reshape(1, -1)[:, :C].astype(jnp.float32)
    filt = jnp.exp(-((omega - fc) / (2.0 * fb)) ** 2)         # (K, C)

    # Column n of the slab is (b, c) with n = b*C + c -> per-column filter pattern
    # has period C. If col_tile % C == 0 every column tile sees the same pattern,
    # so a single grid-invariant (2K_pad, col_tile) tile suffices (no per-tile DMA).
    filter_invariant = (col_tile % C == 0)
    if filter_invariant:
        base = jnp.tile(filt, (1, col_tile // C))             # (K, col_tile)
        filt_cols = col_tile
    else:
        base = jnp.zeros((K, N_pad), jnp.float32).at[:, :N].set(jnp.tile(filt, (1, B)))
        filt_cols = N_pad
    filt_in = jnp.zeros((2 * K_pad, filt_cols), jnp.float32)
    filt_in = filt_in.at[:K, :].set(base).at[K_pad:K_pad + K, :].set(base)

    # Lane-dense zero-padded slab: (B, T, C) -> (T_pad, N_pad).
    # TODO(synk): when jitted with neighbouring ops, keep the slab layout across
    # ops / use allow_input_fusion so this transpose+pad fuses into the operand.
    x2 = jnp.transpose(x, (1, 0, 2)).reshape(T, N).astype(jnp.float32)
    x_pad = jnp.zeros((T_pad, N_pad), jnp.float32).at[:T, :N].set(x2)

    vmem_limit = int(min(max(vmem_needed(col_tile, T_tile) + (4 << 20), 16 << 20),
                         budget))

    cost = pl.CostEstimate(
        flops=int(4 * K_pad * T_pad * N_pad * (n_row_tiles + 1)),   # two fused matmuls
        transcendentals=0,
        bytes_accessed=int(4 * (2 * T_pad * N_pad                    # x + out
                                + 2 * 2 * K_pad * T_pad              # W + V
                                + 2 * K_pad * filt_cols)),           # filter
    )

    grid = (n_row_tiles, n_col_tiles)
    out_shape = jax.ShapeDtypeStruct((T_pad, N_pad), jnp.float32)
    filt_index_map = (lambda i, j: (0, 0)) if filter_invariant else (lambda i, j: (0, j))

    def build(single_buffer_invariant):
        def spec(shape, imap, invariant):
            if invariant and single_buffer_invariant:
                # Grid-invariant operand: double-buffering only doubles VMEM.
                return pl.BlockSpec(shape, imap,
                                    pipeline_mode=pl.Buffered(buffer_count=1))
            return pl.BlockSpec(shape, imap)

        in_specs = [
            spec((T_pad, col_tile), lambda i, j: (0, j), n_col_tiles == 1),    # x slab
            spec((2 * K_pad, T_pad), lambda i, j: (0, 0), True),               # W
            spec((T_tile, 2 * K_pad), lambda i, j: (i, 0), n_row_tiles == 1),  # V rows
            spec((2 * K_pad, col_tile), filt_index_map, filter_invariant),     # filter
        ]
        return pl.pallas_call(
            wave_filters_kernel,
            out_shape=out_shape,
            grid=grid,
            in_specs=in_specs,
            out_specs=pl.BlockSpec((T_tile, col_tile), lambda i, j: (i, j)),
            compiler_params=pltpu.CompilerParams(
                dimension_semantics=("parallel", "parallel"),
                vmem_limit_bytes=vmem_limit,
            ),
            cost_estimate=cost,
        )

    try:
        out_pad = build(True)(x_pad, W, V, filt_in)
    except Exception:
        # Fall back to default double-buffering if Buffered(1) is rejected.
        out_pad = build(False)(x_pad, W, V, filt_in)

    # (T_pad, N_pad) -> (B, T, C)
    out2 = out_pad[:T, :N]
    return jnp.transpose(out2.reshape(T, B, C), (1, 0, 2))


def reference_forward(x, f_c, f_b):
    """Pure-JAX reference mirroring the PyTorch module semantics."""
    B, T, C = x.shape
    K = T // 2 + 1
    freq = jnp.fft.rfft(x, axis=1, norm="ortho")              # (B, K, C) complex
    omega = jnp.linspace(0.0, 0.5, K).reshape(1, K, 1)
    filters = jnp.exp(-((omega - f_c) / (2.0 * f_b)) ** 2)    # (1, K, scale)
    filtered = freq * filters[:, :, :C]
    x_hat = jnp.fft.irfft(filtered, n=T, axis=1, norm="ortho")
    return jnp.real(x_hat).astype(jnp.float32)


if __name__ == "__main__":
    # args: in_dim=16, in_channels=scale=4, f_c ~ N(0.2, 0.05), f_b ~ N(0.1, 0.02)
    B, T, C = 2, 16, 4
    scale = C

    key = jax.random.PRNGKey(0)
    kx, kc, kb = jax.random.split(key, 3)
    x = jax.random.normal(kx, (B, T, C), dtype=jnp.float32)
    f_c = 0.2 + 0.05 * jax.random.normal(kc, (1, 1, scale), dtype=jnp.float32)
    f_b = 0.1 + 0.02 * jax.random.normal(kb, (1, 1, scale), dtype=jnp.float32)

    out = wave_filters_forward(x, f_c, f_b)
    out = jax.block_until_ready(out)

    ref = reference_forward(x, f_c, f_b)
    assert out.shape == (B, T, C), out.shape
    assert jnp.allclose(out, ref, atol=1e-4, rtol=1e-4), \
        f"max abs err = {jnp.max(jnp.abs(out - ref))}"

    print("KERNEL_OK")
</pallas_src>

<mosaic_0001>
module attributes {stable_mosaic.version = 11 : i64} {
  func.func @wave_filters_kernel(%arg0: i32, %arg1: i32, %arg2: memref<16x128xf32, #tpu.memory_space<vmem>>, %arg3: memref<32x16xf32, #tpu.memory_space<vmem>>, %arg4: memref<8x32xf32, #tpu.memory_space<vmem>>, %arg5: memref<32x128xf32, #tpu.memory_space<vmem>>, %arg6: memref<8x128xf32, #tpu.memory_space<vmem>>) attributes {dimension_semantics = [#tpu.dimension_semantics<parallel>, #tpu.dimension_semantics<parallel>], iteration_bounds = array<i64: 2, 1>, scalar_prefetch = 0 : i64, scratch_operands = 0 : i64, tpu.core_type = #tpu.core_type<tc>, window_params = [{pipeline_mode = #tpu.pipeline_mode<synchronous>, transform_indices = @transform_0, window_bounds = array<i64: 16, 128>}, {pipeline_mode = #tpu.pipeline_mode<synchronous>, transform_indices = @transform_1, window_bounds = array<i64: 32, 16>}, {transform_indices = @transform_2, window_bounds = array<i64: 8, 32>}, {pipeline_mode = #tpu.pipeline_mode<synchronous>, transform_indices = @transform_3, window_bounds = array<i64: 32, 128>}, {transform_indices = @transform_4, window_bounds = array<i64: 8, 128>}]} {
    %c0 = arith.constant 0 : index
    %c0_0 = arith.constant 0 : index
    %0 = vector.load %arg3[%c0, %c0_0] : memref<32x16xf32, #tpu.memory_space<vmem>>, vector<32x16xf32>
    %c0_1 = arith.constant 0 : index
    %c0_2 = arith.constant 0 : index
    %1 = vector.load %arg2[%c0_1, %c0_2] : memref<16x128xf32, #tpu.memory_space<vmem>>, vector<16x128xf32>
    %cst = arith.constant dense<0.000000e+00> : vector<32x128xf32>
    %2 = tpu.matmul %0, %1, %cst {dimension_numbers = #tpu.dot_dimension_numbers<[1], [0], [0], [1], [0, 0, 1, 1], [], []>} : vector<32x16xf32>, vector<16x128xf32>, vector<32x128xf32> -> vector<32x128xf32>
    %c0_3 = arith.constant 0 : index
    %c0_4 = arith.constant 0 : index
    %3 = vector.load %arg5[%c0_3, %c0_4] : memref<32x128xf32, #tpu.memory_space<vmem>>, vector<32x128xf32>
    %4 = arith.mulf %2, %3 : vector<32x128xf32>
    %c0_5 = arith.constant 0 : index
    %c0_6 = arith.constant 0 : index
    %5 = vector.load %arg4[%c0_5, %c0_6] : memref<8x32xf32, #tpu.memory_space<vmem>>, vector<8x32xf32>
    %cst_7 = arith.constant dense<0.000000e+00> : vector<8x128xf32>
    %6 = tpu.matmul %5, %4, %cst_7 {dimension_numbers = #tpu.dot_dimension_numbers<[1], [0], [0], [1], [0, 0, 1, 1], [], []>} : vector<8x32xf32>, vector<32x128xf32>, vector<8x128xf32> -> vector<8x128xf32>
    %c0_8 = arith.constant 0 : index
    %c0_9 = arith.constant 0 : index
    %7 = vector.load %arg6[%c0_8, %c0_9] : memref<8x128xf32, #tpu.memory_space<vmem>>, vector<8x128xf32>
    tpu.vector_store %arg6[%c0_8, %c0_9], %6 {strides = array<i32>} : memref<8x128xf32, #tpu.memory_space<vmem>>, vector<8x128xf32>,
    return
  }
  func.func @transform_0(%arg0: i32, %arg1: i32) -> (i32, i32) {
    %c0_i32 = arith.constant 0 : i32
    %c0_i32_0 = arith.constant 0 : i32
    return %c0_i32, %arg1 : i32, i32
  }
  func.func @transform_1(%arg0: i32, %arg1: i32) -> (i32, i32) {
    %c0_i32 = arith.constant 0 : i32
    %c0_i32_0 = arith.constant 0 : i32
    %c0_i32_1 = arith.constant 0 : i32
    return %c0_i32, %c0_i32_0 : i32, i32
  }
  func.func @transform_2(%arg0: i32, %arg1: i32) -> (i32, i32) {
    %c0_i32 = arith.constant 0 : i32
    %c0_i32_0 = arith.constant 0 : i32
    return %arg0, %c0_i32 : i32, i32
  }
  func.func @transform_3(%arg0: i32, %arg1: i32) -> (i32, i32) {
    %c0_i32 = arith.constant 0 : i32
    %c0_i32_0 = arith.constant 0 : i32
    %c0_i32_1 = arith.constant 0 : i32
    return %c0_i32, %c0_i32_0 : i32, i32
  }
  func.func @transform_4(%arg0: i32, %arg1: i32) -> (i32, i32) {
    %c0_i32 = arith.constant 0 : i32
    return %arg0, %arg1 : i32, i32
  }
}

module attributes {stable_mosaic.version = 11 : i64} {
  func.func @wave_filters_kernel(%arg0: i32, %arg1: i32, %arg2: memref<16x128xf32, #tpu.memory_space<vmem>>, %arg3: memref<32x16xf32, #tpu.memory_space<vmem>>, %arg4: memref<8x32xf32, #tpu.memory_space<vmem>>, %arg5: memref<32x128xf32, #tpu.memory_space<vmem>>, %arg6: memref<8x128xf32, #tpu.memory_space<vmem>>) attributes {dimension_semantics = [#tpu.dimension_semantics<parallel>, #tpu.dimension_semantics<parallel>], iteration_bounds = array<i64: 2, 1>, scalar_prefetch = 0 : i64, scratch_operands = 0 : i64, tpu.core_type = #tpu.core_type<tc>, window_params = [{transform_indices = @transform_0, window_bounds = array<i64: 16, 128>}, {pipeline_mode = #tpu.pipeline_mode<synchronous>, transform_indices = @transform_1, window_bounds = array<i64: 32, 16>}, {transform_indices = @transform_2, window_bounds = array<i64: 8, 32>}, {pipeline_mode = #tpu.pipeline_mode<synchronous>, transform_indices = @transform_3, window_bounds = array<i64: 32, 128>}, {transform_indices = @transform_4, window_bounds = array<i64: 8, 128>}]} {
    %c0 = arith.constant 0 : index
    %c0_0 = arith.constant 0 : index
    %0 = vector.load %arg3[%c0, %c0_0] : memref<32x16xf32, #tpu.memory_space<vmem>>, vector<32x16xf32>
    %c0_1 = arith.constant 0 : index
    %c0_2 = arith.constant 0 : index
    %1 = vector.load %arg2[%c0_1, %c0_2] : memref<16x128xf32, #tpu.memory_space<vmem>>, vector<16x128xf32>
    %cst = arith.constant dense<0.000000e+00> : vector<32x128xf32>
    %2 = tpu.matmul %0, %1, %cst {dimension_numbers = #tpu.dot_dimension_numbers<[1], [0], [0], [1], [0, 0, 1, 1], [], []>} : vector<32x16xf32>, vector<16x128xf32>, vector<32x128xf32> -> vector<32x128xf32>
    %c0_3 = arith.constant 0 : index
    %c0_4 = arith.constant 0 : index
    %3 = vector.load %arg5[%c0_3, %c0_4] : memref<32x128xf32, #tpu.memory_space<vmem>>, vector<32x128xf32>
    %4 = arith.mulf %2, %3 : vector<32x128xf32>
    %c0_5 = arith.constant 0 : index
    %c0_6 = arith.constant 0 : index
    %5 = vector.load %arg4[%c0_5, %c0_6] : memref<8x32xf32, #tpu.memory_space<vmem>>, vector<8x32xf32>
    %cst_7 = arith.constant dense<0.000000e+00> : vector<8x128xf32>
    %6 = tpu.matmul %5, %4, %cst_7 {dimension_numbers = #tpu.dot_dimension_numbers<[1], [0], [0], [1], [0, 0, 1, 1], [], []>} : vector<8x32xf32>, vector<32x128xf32>, vector<8x128xf32> -> vector<8x128xf32>
    %c0_8 = arith.constant 0 : index
    %c0_9 = arith.constant 0 : index
    %7 = vector.load %arg6[%c0_8, %c0_9] : memref<8x128xf32, #tpu.memory_space<vmem>>, vector<8x128xf32>
    tpu.vector_store %arg6[%c0_8, %c0_9], %6 {strides = array<i32>} : memref<8x128xf32, #tpu.memory_space<vmem>>, vector<8x128xf32>,
    return
  }
  func.func @transform_0(%arg0: i32, %arg1: i32) -> (i32, i32) {
    %c0_i32 = arith.constant 0 : i32
    %c0_i32_0 = arith.constant 0 : i32
    return %c0_i32, %arg1 : i32, i32
  }
  func.func @transform_1(%arg0: i32, %arg1: i32) -> (i32, i32) {
    %c0_i32 = arith.constant 0 : i32
    %c0_i32_0 = arith.constant 0 : i32
    %c0_i32_1 = arith.constant 0 : i32
    return %c0_i32, %c0_i32_0 : i32, i32
  }
  func.func @transform_2(%arg0: i32, %arg1: i32) -> (i32, i32) {
    %c0_i32 = arith.constant 0 : i32
    %c0_i32_0 = arith.constant 0 : i32
    return %arg0, %c0_i32 : i32, i32
  }
  func.func @transform_3(%arg0: i32, %arg1: i32) -> (i32, i32) {
    %c0_i32 = arith.constant 0 : i32
    %c0_i32_0 = arith.constant 0 : i32
    %c0_i32_1 = arith.constant 0 : i32
    return %c0_i32, %c0_i32_0 : i32, i32
  }
  func.func @transform_4(%arg0: i32, %arg1: i32) -> (i32, i32) {
    %c0_i32 = arith.constant 0 : i32
    return %arg0, %arg1 : i32, i32
  }
}

</mosaic_0001>

<llo_original>
// kernel: tpu_custom_call.1
$region0: #{tpu_custom_call.1}
  #allocation0 [shape = 'u32[]', space=smem, size = 0x4, offset = 0x4, fixed_abs, tag = 'smem constant byte address 0x4 - core index']
  #allocation1 [shape = 'u32[144,128]{1,0:T(1,128)}', space=vmem, size = 0x12000, scoped, tag = 'internal scratch']
  %s0 = inlined_call_operand.vmem [shape: f32[16,128], index: 0, kind: input, shape index: {}]
  %s1 = inlined_call_operand.vmem [shape: f32[32,16], index: 1, kind: input, shape index: {}]
  %s2 = inlined_call_operand.hbm [shape: f32[16,32], index: 2, kind: input, shape index: {}]
  %s3 = inlined_call_operand.vmem [shape: f32[32,128], index: 3, kind: input, shape index: {}]
  %s4 = inlined_call_operand.hbm [shape: f32[16,128], index: 4, kind: output, shape index: {}]
  %s5 = sld [smem:[#allocation0]]
  $region53: #{tpu_custom_call.1} parent=0
    _
  %s7 = ssub.s32 1, %s5
  %s8 = scalar_select 0, %s7, %s5
  $region1: #{tpu_custom_call.1} parent=0
    #allocation2 [shape = 'u8[8192]{0}', space=vmem, size = 0x2000, scoped, tag = 'input window, operand 2']
    #allocation3 [shape = 's32[2]{0}', space=sflag, size = 0x8, scoped, tag = 'scoped memory for tpu_custom_call.1']
    #allocation4 [shape = 's32[2]{0}', space=sflag, size = 0x8, scoped, tag = 'scoped memory for tpu_custom_call.1']
    #allocation5 [shape = 'u8[8192]{0}', space=vmem, size = 0x2000, scoped, tag = 'output window, operand 0']
    %9 = vsyncpa [#allocation3], 0
    %s10 = scalar_lea.sflag [#allocation3], 1
    %11 = vsyncpa %s10, 0
    %12 = vsyncpa [#allocation4], 0
    %s13 = scalar_lea.sflag [#allocation4], 1
    %14 = vsyncpa %s13, 0
    loop: start=0, step=1, limit=4
    $region2: #{tpu_custom_call.1} parent=1 // loop_pre_header
      _
    $region3: #{tpu_custom_call.1} parent=1 // loop_header
      %s16 = sphi 0, %s20
      %p17 = scmp.ge.s32.totalorder %s16, 4
      %s23 = sphi 0, %s35
      %s24 = sphi 0, %s31
      %s25 = sphi 0, %s23
      %s26 = sphi 0, %s24
      %s27 = sphi 0, %s25
      %s28 = sphi 0, %s26
      %s38 = sphi 0, %s40
      %s41 = sphi 0, %s38
      %s42 = sphi 0, %s41
      %s58 = sphi 0, %s42
      %s62 = sphi 0, %s62
      %s64 = sphi 0, %s62
      %s65 = sphi 0, %s64
      %s79 = sphi 0, %s65
      %s85 = sphi 0, %s87
      %s88 = sphi 0, %s85
      %s89 = sphi 0, %s88
      %s105 = sphi 0, %s89
      %s109 = sphi 0, %s109
      %s111 = sphi 0, %s109
      %s112 = sphi 0, %s111
      %s126 = sphi 0, %s112
      %s134 = sphi 0, %s136
      %s137 = sphi 0, %s134
      %s138 = sphi 0, %s137
      %s154 = sphi 0, %s138
    $region4: #{tpu_custom_call.1} parent=1 // loop_header_branch
      %19 = sbr.rel (%p17) target = $region8
    $region5: #{tpu_custom_call.1} parent=1 // loop_body
      %s21 = ssub.s32 %s16, 1
      %s22 = ssub.s32 %s16, 2
      %s29 = sadd.s32 1, %s24
      %p30 = scmp.ge.s32.totalorder %s29, 1
      %s31 = scalar_select %p30, 0, %s29
      %s32 = sadd.s32 1, %s23
      %s33 = scalar_select %p30, %s32, %s23
      %p34 = scmp.ge.s32.totalorder %s33, 2
      %s35 = scalar_select %p34, 0, %s33
      %s36 = ssub.s32 %s24, %s31
      %p37 = scmp.eq.s32.totalorder %s36, 0
      %s39 = sadd.s32 %s38, 1
      %s40 = scalar_select %p37, %s38, %s39
      %p43 = pneg %p37
      %p44 = scmp.eq.s32.totalorder %s16, 1
      %p45 = por %p43, %p44
      %p46 = scmp.ne.s32.totalorder %s38, %s41
      %p47 = scmp.eq.s32.totalorder %s16, 0
      %p48 = por %p46, %p47
      %p49 = scmp.ne.s32.totalorder %s38, %s41
      %p50 = scmp.eq.s32.totalorder %s21, 1
      %p51 = por %p49, %p50
      %p52 = scmp.ne.s32.totalorder %s41, %s42
      %p53 = scmp.eq.s32.totalorder %s21, 0
      %p54 = por %p52, %p53
      %p55 = scmp.ne.s32.totalorder %s41, %s42
      %p56 = scmp.eq.s32.totalorder %s22, 1
      %p57 = por %p55, %p56
      %p59 = scmp.ne.s32.totalorder %s42, %s58
      %p60 = scmp.eq.s32.totalorder %s22, 0
      %p61 = por %p59, %p60
      %s63 = sadd.s32 %s62, 1
      %p66 = scmp.eq.s32.totalorder %s16, 1
      %p67 = scmp.ne.s32.totalorder %s62, %s64
      %p68 = scmp.eq.s32.totalorder %s16, 0
      %p69 = por %p67, %p68
      %p70 = scmp.ne.s32.totalorder %s62, %s64
      %p71 = scmp.eq.s32.totalorder %s21, 1
      %p72 = por %p70, %p71
      %p73 = scmp.ne.s32.totalorder %s64, %s65
      %p74 = scmp.eq.s32.totalorder %s21, 0
      %p75 = por %p73, %p74
      %p76 = scmp.ne.s32.totalorder %s64, %s65
      %p77 = scmp.eq.s32.totalorder %s22, 1
      %p78 = por %p76, %p77
      %p80 = scmp.ne.s32.totalorder %s65, %s79
      %p81 = scmp.eq.s32.totalorder %s22, 0
      %p82 = por %p80, %p81
      %s83 = ssub.s32 %s23, %s35
      %p84 = scmp.eq.s32.totalorder %s83, 0
      %s86 = sadd.s32 %s85, 1
      %s87 = scalar_select %p84, %s85, %s86
      %p90 = pneg %p84
      %p91 = scmp.eq.s32.totalorder %s16, 1
      %p92 = por %p90, %p91
      %p93 = scmp.ne.s32.totalorder %s85, %s88
      %p94 = scmp.eq.s32.totalorder %s16, 0
      %p95 = por %p93, %p94
      %p96 = scmp.ne.s32.totalorder %s85, %s88
      %p97 = scmp.eq.s32.totalorder %s21, 1
      %p98 = por %p96, %p97
      %p99 = scmp.ne.s32.totalorder %s88, %s89
      %p100 = scmp.eq.s32.totalorder %s21, 0
      %p101 = por %p99, %p100
      %p102 = scmp.ne.s32.totalorder %s88, %s89
      %p103 = scmp.eq.s32.totalorder %s22, 1
      %p104 = por %p102, %p103
      %p106 = scmp.ne.s32.totalorder %s89, %s105
      %p107 = scmp.eq.s32.totalorder %s22, 0
      %p108 = por %p106, %p107
      %s110 = sadd.s32 %s109, 1
      %p113 = scmp.eq.s32.totalorder %s16, 1
      %p114 = scmp.ne.s32.totalorder %s109, %s111
      %p115 = scmp.eq.s32.totalorder %s16, 0
      %p116 = por %p114, %p115
      %p117 = scmp.ne.s32.totalorder %s109, %s111
      %p118 = scmp.eq.s32.totalorder %s21, 1
      %p119 = por %p117, %p118
      %p120 = scmp.ne.s32.totalorder %s111, %s112
      %p121 = scmp.eq.s32.totalorder %s21, 0
      %p122 = por %p120, %p121
      %p123 = scmp.ne.s32.totalorder %s111, %s112
      %p124 = scmp.eq.s32.totalorder %s22, 1
      %p125 = por %p123, %p124
      %p127 = scmp.ne.s32.totalorder %s112, %s126
      %p128 = scmp.eq.s32.totalorder %s22, 0
      %p129 = por %p127, %p128
      %s130 = ssub.s32 %s23, %s35
      %s131 = ssub.s32 %s24, %s31
      %s132 = sor.u32 %s130, %s131
      %p133 = scmp.eq.s32.totalorder %s132, 0
      %s135 = sadd.s32 %s134, 1
      %s136 = scalar_select %p133, %s134, %s135
      %p139 = pneg %p133
      %p140 = scmp.eq.s32.totalorder %s16, 1
      %p141 = por %p139, %p140
      %p142 = scmp.ne.s32.totalorder %s134, %s137
      %p143 = scmp.eq.s32.totalorder %s16, 0
      %p144 = por %p142, %p143
      %p145 = scmp.ne.s32.totalorder %s134, %s137
      %p146 = scmp.eq.s32.totalorder %s21, 1
      %p147 = por %p145, %p146
      %p148 = scmp.ne.s32.totalorder %s137, %s138
      %p149 = scmp.eq.s32.totalorder %s21, 0
      %p150 = por %p148, %p149
      %p151 = scmp.ne.s32.totalorder %s137, %s138
      %p152 = scmp.eq.s32.totalorder %s22, 1
      %p153 = por %p151, %p152
      %p155 = scmp.ne.s32.totalorder %s138, %s154
      %p156 = scmp.eq.s32.totalorder %s22, 0
      %p157 = por %p155, %p156
      %p158 = scmp.le.s32.totalorder 1, %s16
      %p159 = scmp.lt.s32.totalorder %s16, 3
      %p160 = pnand %p158, %p159
      %p161 = pneg %p160
      // Predicated region
      $region9: #{tpu_custom_call.1} parent=5 // pred_check
        _
      $region10: #{tpu_custom_call.1} parent=5 // pred_check_branch
        %163 = sbr.rel (%p160) target = $region12
      $region11: #{tpu_custom_call.1} parent=5 // pred_region
        %s164 = ssub.s32 %s16, 1
        // Predicated region
        $region13: #{tpu_custom_call.1} parent=11 // pred_check
          %p165 = pneg %p54
        $region14: #{tpu_custom_call.1} parent=11 // pred_check_branch
          %167 = sbr.rel (%p165) target = $region16
        $region15: #{tpu_custom_call.1} parent=11 // pred_region
          %p168 = scmp.lt.s32.totalorder %s26, 0
          %s169 = scalar_select %p168, %s26, 0
          %s170 = smul.addr %s169, 8
          %s171 = scalar_lea.vmem %s0, %s170
        $region16: #{tpu_custom_call.1} parent=11 // pred_fallthru
          _
        // Predicated region
        $region17: #{tpu_custom_call.1} parent=11 // pred_check
          %p172 = pneg %p75
        $region18: #{tpu_custom_call.1} parent=11 // pred_check_branch
          %174 = sbr.rel (%p172) target = $region20
        $region19: #{tpu_custom_call.1} parent=11 // pred_region
          _
        $region20: #{tpu_custom_call.1} parent=11 // pred_fallthru
          _
        // Predicated region
        $region21: #{tpu_custom_call.1} parent=11 // pred_check
          %p175 = pneg %p122
        $region22: #{tpu_custom_call.1} parent=11 // pred_check_branch
          %177 = sbr.rel (%p175) target = $region24
        $region23: #{tpu_custom_call.1} parent=11 // pred_region
          _
        $region24: #{tpu_custom_call.1} parent=11 // pred_fallthru
          _
      $region12: #{tpu_custom_call.1} parent=5 // pred_fallthru
        _
      %p178 = scmp.lt.s32.totalorder %s16, 2
      // Predicated region
      $region25: #{tpu_custom_call.1} parent=5 // pred_check
        %p179 = pneg %p178
      $region26: #{tpu_custom_call.1} parent=5 // pred_check_branch
        %181 = sbr.rel (%p179) target = $region28
      $region27: #{tpu_custom_call.1} parent=5 // pred_region
        // Predicated region
        $region29: #{tpu_custom_call.1} parent=27 // pred_check
          %p182 = pneg %p95
        $region30: #{tpu_custom_call.1} parent=27 // pred_check_branch
          %184 = sbr.rel (%p182) target = $region32
        $region31: #{tpu_custom_call.1} parent=27 // pred_region
          %s185 = sand.u32 %s85, 1
          %s186 = scalar_lea.sflag [#allocation3], %s185
          %s187 = sand.u32 %s85, 1
          %s188 = smul.addr %s187, 8
          %s189 = scalar_lea.vmem [#allocation2], %s188
          %s191 = ssub.s32 128, 128
          %192 = vsyncadd %s186, %s191
          %s193 = smul.addr %s23, 128
          %s194 = scalar_lea.hbm %s2, %s193
          %s196 = sshll.u32 %s189, 4
          %s197 = int_to_ptr.vmem [resolvable:$true] %s196
          %199 = dma.hbm_to_vmem [thread:$0]  %s194, 128, %s197, %s186
        $region32: #{tpu_custom_call.1} parent=27 // pred_fallthru
          _
      $region28: #{tpu_custom_call.1} parent=5 // pred_fallthru
        _
      %p200 = scmp.le.s32.totalorder 1, %s16
      %p201 = scmp.lt.s32.totalorder %s16, 3
      %p202 = pnand %p200, %p201
      %p203 = pneg %p202
      // Predicated region
      $region33: #{tpu_custom_call.1} parent=5 // pred_check
        _
      $region34: #{tpu_custom_call.1} parent=5 // pred_check_branch
        %205 = sbr.rel (%p202) target = $region36
      $region35: #{tpu_custom_call.1} parent=5 // pred_region
        %s206 = ssub.s32 %s16, 1
        %s207 = sand.u32 %s88, 1
        %s208 = scalar_lea.sflag [#allocation3], %s207
        %s209 = sand.u32 %s88, 1
        %s210 = smul.addr %s209, 8
        %s211 = scalar_lea.vmem [#allocation2], %s210
        // Predicated region
        $region37: #{tpu_custom_call.1} parent=35 // pred_check
          %p212 = pneg %p101
        $region38: #{tpu_custom_call.1} parent=35 // pred_check_branch
          %214 = sbr.rel (%p212) target = $region40
        $region39: #{tpu_custom_call.1} parent=35 // pred_region
          %215 = dma.done %s208, 128
        $region40: #{tpu_custom_call.1} parent=35 // pred_fallthru
          _
        %p216 = scmp.lt.s32.totalorder %s26, 0
        %s217 = scalar_select %p216, %s26, 0
        %s218 = smul.addr %s217, 8
        %s219 = scalar_lea.vmem %s0, %s218
        %p220 = pneg %p54
        %p221 = pneg %p51
        %p222 = pneg %p75
        %p223 = pneg %p72
        %s224 = sand.u32 %s88, 1
        %s225 = scalar_lea.sflag [#allocation3], %s224
        %s226 = sand.u32 %s88, 1
        %s227 = smul.addr %s226, 8
        %s228 = scalar_lea.vmem [#allocation2], %s227
        %p229 = pneg %p101
        %p230 = pneg %p98
        %p231 = pneg %p122
        %p232 = pneg %p119
        %p233 = pneg %p150
        %p234 = pneg %p147
        %s235 = sand.u32 %s137, 1
        %s236 = scalar_lea.sflag [#allocation4], %s235
        %s237 = sand.u32 %s137, 1
        %s238 = smul.addr %s237, 8
        %s239 = scalar_lea.vmem [#allocation5], %s238
        %p240 = scmp.lt.s32.totalorder %s26, 0
        %s241 = scalar_select %p240, %s26, 0
        %s242 = smul.addr %s241, 8
        %s243 = scalar_lea.vmem %s0, %s242
        %v244 = vld [vmem:[%s1] sm:$0xff]
        %v245 = vld [vmem:[%s1 + $0x8] sm:$0xff]
        %v246 = vld [vmem:[%s1 + $0x10] sm:$0xff]
        %v247 = vld [vmem:[%s1 + $0x18] sm:$0xff]
        %v248 = vld [vmem:[%s243] sm:$0xff]
        %v249 = vld [vmem:[%s243 + $0x8] sm:$0xff]
        %vm250 = vcmask 130048
        %v252 = vsel %vm250, %v244, 0
        %v255 = vsel %vm250, %v245, 0
        %v258 = vsel %vm250, %v246, 0
        %v261 = vsel %vm250, %v247, 0
        %263 = vmatprep.subr.mxu0 0.0
        %264 = vmatpush1.msra.mxu0 %v248
        %265 = vmatprep.subr.mxu0 0.0
        %266 = vmatpush1.msra.mxu0 %v249
        %267 = vmatprep.subr.mxu0 0.0
        %268 = vmatpush1.msra.mxu0 0.0
        %269 = vmatprep.subr.mxu0 0.0
        %270 = vmatpush1.msra.mxu0 0.0
        %271 = vmatprep.subr.mxu0 0.0
        %272 = vmatpush1.msra.mxu0 0.0
        %273 = vmatprep.subr.mxu0 0.0
        %274 = vmatpush1.msra.mxu0 0.0
        %275 = vmatprep.subr.mxu0 0.0
        %276 = vmatpush1.msra.mxu0 0.0
        %277 = vmatprep.subr.mxu0 0.0
        %278 = vmatpush1.msra.mxu0 0.0
        %279 = vmatprep.subr.mxu0 0.0
        %280 = vmatpush1.msra.mxu0 0.0
        %281 = vmatprep.subr.mxu0 0.0
        %282 = vmatpush1.msra.mxu0 0.0
        %283 = vmatprep.subr.mxu0 0.0
        %284 = vmatpush1.msra.mxu0 0.0
        %285 = vmatprep.subr.mxu0 0.0
        %286 = vmatpush1.msra.mxu0 0.0
        %287 = vmatprep.subr.mxu0 0.0
        %288 = vmatpush1.msra.mxu0 0.0
        %289 = vmatprep.subr.mxu0 0.0
        %290 = vmatpush1.msra.mxu0 0.0
        %291 = vmatprep.subr.mxu0 0.0
        %292 = vmatpush1.msra.mxu0 0.0
        %293 = vmatprep.subr.mxu0 0.0
        %294 = vmatpush1.msra.mxu0 0.0
        %295 = vmatprep.subr.mxu0 0.0
        %296 = vmatpush1.msra.mxu0 0.0
        %297 = vmatprep.subr.mxu0 0.0
        %298 = vmatpush1.msra.mxu0 0.0
        %299 = vmatprep.subr.mxu0 0.0
        %300 = vmatpush1.msra.mxu0 0.0
        %301 = vmatprep.subr.mxu0 0.0
        %302 = vmatpush1.msra.mxu0 0.0
        %303 = vmatprep.subr.mxu0 0.0
        %304 = vmatpush1.msra.mxu0 0.0
        %305 = vmatprep.subr.mxu0 0.0
        %306 = vmatpush1.msra.mxu0 0.0
        %307 = vmatprep.subr.mxu0 0.0
        %308 = vmatpush1.msra.mxu0 0.0
        %309 = vmatprep.subr.mxu0 0.0
        %310 = vmatpush1.msra.mxu0 0.0
        %311 = vmatprep.subr.mxu0 0.0
        %312 = vmatpush1.msra.mxu0 0.0
        %313 = vmatprep.subr.mxu0 0.0
        %314 = vmatpush1.msra.mxu0 0.0
        %315 = vmatprep.subr.mxu0 0.0
        %316 = vmatpush1.msra.mxu0 0.0
        %317 = vmatprep.subr.mxu0 0.0
        %318 = vmatpush1.msra.mxu0 0.0
        %319 = vmatprep.subr.mxu0 0.0
        %320 = vmatpush1.msra.mxu0 0.0
        %321 = vmatprep.subr.mxu0 0.0
        %322 = vmatpush1.msra.mxu0 0.0
        %323 = vmatprep.subr.mxu0 0.0
        %324 = vmatpush1.msra.mxu0 0.0
        %325 = vmatprep.subr.mxu0 0.0
        %326 = vmatpush1.msra.mxu0 0.0
        %327 = vmatprep.mubr.f32.mxu0 0.0
        %328 = vmatmul.mubr.f32.gmra.mrb[0].mxu0 %v252
        %v329 = vpop.f32.mrb[0].mxu0
        %v330 = vadd.f32 0.0, %v329
        %v331 = vpop.f32.mrb[0].mxu0
        %332 = vmatprep.mubr.f32.mxu0 0.0
        %333 = vmatmul.mubr.f32.gmra.mrb[0].mxu0 %v255
        %v334 = vpop.f32.mrb[0].mxu0
        %v335 = vadd.f32 0.0, %v334
        %v336 = vpop.f32.mrb[0].mxu0
        %337 = vmatprep.mubr.f32.mxu0 0.0
        %338 = vmatmul.mubr.f32.gmra.mrb[0].mxu0 %v258
        %v339 = vpop.f32.mrb[0].mxu0
        %v340 = vadd.f32 0.0, %v339
        %v341 = vpop.f32.mrb[0].mxu0
        %342 = vmatprep.mubr.f32.mxu0 0.0
        %343 = vmatmul.mubr.f32.gmra.mrb[0].mxu0 %v261
        %v344 = vpop.f32.mrb[0].mxu0
        %v345 = vadd.f32 0.0, %v344
        %v346 = vpop.f32.mrb[0].mxu0
        %347 = vdwg.mxu0
        %v348 = vld [vmem:[%s3] sm:$0xff]
        %v349 = vld [vmem:[%s3 + $0x8] sm:$0xff]
        %v350 = vld [vmem:[%s3 + $0x10] sm:$0xff]
        %v351 = vld [vmem:[%s3 + $0x18] sm:$0xff]
        %v352 = vmul.f32 %v330, %v348
        %v353 = vmul.f32 %v335, %v349
        %v354 = vmul.f32 %v340, %v350
        %v355 = vmul.f32 %v345, %v351
        %v356 = vld [vmem:[%s211] sm:$0xff]
        %vm357 = vcmask 261120
        %v359 = vsel %vm357, %v356, 0
        %361 = vmatprep.subr.mxu0 0.0
        %362 = vmatpush1.msra.mxu0 %v352
        %363 = vmatprep.subr.mxu0 0.0
        %364 = vmatpush1.msra.mxu0 %v353
        %365 = vmatprep.subr.mxu0 0.0
        %366 = vmatpush1.msra.mxu0 %v354
        %367 = vmatprep.subr.mxu0 0.0
        %368 = vmatpush1.msra.mxu0 %v355
        %369 = vmatprep.subr.mxu0 0.0
        %370 = vmatpush1.msra.mxu0 0.0
        %371 = vmatprep.subr.mxu0 0.0
        %372 = vmatpush1.msra.mxu0 0.0
        %373 = vmatprep.subr.mxu0 0.0
        %374 = vmatpush1.msra.mxu0 0.0
        %375 = vmatprep.subr.mxu0 0.0
        %376 = vmatpush1.msra.mxu0 0.0
        %377 = vmatprep.subr.mxu0 0.0
        %378 = vmatpush1.msra.mxu0 0.0
        %379 = vmatprep.subr.mxu0 0.0
        %380 = vmatpush1.msra.mxu0 0.0
        %381 = vmatprep.subr.mxu0 0.0
        %382 = vmatpush1.msra.mxu0 0.0
        %383 = vmatprep.subr.mxu0 0.0
        %384 = vmatpush1.msra.mxu0 0.0
        %385 = vmatprep.subr.mxu0 0.0
        %386 = vmatpush1.msra.mxu0 0.0
        %387 = vmatprep.subr.mxu0 0.0
        %388 = vmatpush1.msra.mxu0 0.0
        %389 = vmatprep.subr.mxu0 0.0
        %390 = vmatpush1.msra.mxu0 0.0
        %391 = vmatprep.subr.mxu0 0.0
        %392 = vmatpush1.msra.mxu0 0.0
        %393 = vmatprep.subr.mxu0 0.0
        %394 = vmatpush1.msra.mxu0 0.0
        %395 = vmatprep.subr.mxu0 0.0
        %396 = vmatpush1.msra.mxu0 0.0
        %397 = vmatprep.subr.mxu0 0.0
        %398 = vmatpush1.msra.mxu0 0.0
        %399 = vmatprep.subr.mxu0 0.0
        %400 = vmatpush1.msra.mxu0 0.0
        %401 = vmatprep.subr.mxu0 0.0
        %402 = vmatpush1.msra.mxu0 0.0
        %403 = vmatprep.subr.mxu0 0.0
        %404 = vmatpush1.msra.mxu0 0.0
        %405 = vmatprep.subr.mxu0 0.0
        %406 = vmatpush1.msra.mxu0 0.0
        %407 = vmatprep.subr.mxu0 0.0
        %408 = vmatpush1.msra.mxu0 0.0
        %409 = vmatprep.subr.mxu0 0.0
        %410 = vmatpush1.msra.mxu0 0.0
        %411 = vmatprep.subr.mxu0 0.0
        %412 = vmatpush1.msra.mxu0 0.0
        %413 = vmatprep.subr.mxu0 0.0
        %414 = vmatpush1.msra.mxu0 0.0
        %415 = vmatprep.subr.mxu0 0.0
        %416 = vmatpush1.msra.mxu0 0.0
        %417 = vmatprep.subr.mxu0 0.0
        %418 = vmatpush1.msra.mxu0 0.0
        %419 = vmatprep.subr.mxu0 0.0
        %420 = vmatpush1.msra.mxu0 0.0
        %421 = vmatprep.subr.mxu0 0.0
        %422 = vmatpush1.msra.mxu0 0.0
        %423 = vmatprep.subr.mxu0 0.0
        %424 = vmatpush1.msra.mxu0 0.0
        %425 = vmatprep.mubr.f32.mxu0 0.0
        %426 = vmatmul.mubr.f32.gmra.mrb[0].mxu0 %v359
        %v427 = vpop.f32.mrb[0].mxu0
        %v428 = vadd.f32 0.0, %v427
        %v429 = vpop.f32.mrb[0].mxu0
        %430 = vdwg.mxu0
        %431 = vst [vmem:[%s239] sm:$0xff] %v428
        %s432 = sand.u32 %s137, 1
        %s433 = scalar_lea.sflag [#allocation4], %s432
        %s434 = sand.u32 %s137, 1
        %s435 = smul.addr %s434, 8
        %s436 = scalar_lea.vmem [#allocation5], %s435
        // Predicated region
        $region41: #{tpu_custom_call.1} parent=35 // pred_check
          %p437 = pneg %p147
        $region42: #{tpu_custom_call.1} parent=35 // pred_check_branch
          %439 = sbr.rel (%p437) target = $region44
        $region43: #{tpu_custom_call.1} parent=35 // pred_region
          %s441 = ssub.s32 128, 128
          %442 = vsyncadd %s433, %s441
          %s443 = sadd.s32 %s26, %s25
          %s444 = smul.addr %s443, 128
          %s445 = scalar_lea.hbm %s4, %s444
          %s447 = sshll.u32 %s436, 4
          %s448 = int_to_ptr.vmem [resolvable:$true] %s447
          %450 = dma.vmem_to_hbm [thread:$0]  %s448, 128, %s445, %s433
        $region44: #{tpu_custom_call.1} parent=35 // pred_fallthru
          _
      $region36: #{tpu_custom_call.1} parent=5 // pred_fallthru
        _
      %p451 = scmp.le.s32.totalorder 2, %s16
      // Predicated region
      $region45: #{tpu_custom_call.1} parent=5 // pred_check
        %p452 = pneg %p451
      $region46: #{tpu_custom_call.1} parent=5 // pred_check_branch
        %454 = sbr.rel (%p452) target = $region48
      $region47: #{tpu_custom_call.1} parent=5 // pred_region
        %s455 = ssub.s32 %s16, 2
        // Predicated region
        $region49: #{tpu_custom_call.1} parent=47 // pred_check
          %p456 = pneg %p153
        $region50: #{tpu_custom_call.1} parent=47 // pred_check_branch
          %458 = sbr.rel (%p456) target = $region52
        $region51: #{tpu_custom_call.1} parent=47 // pred_region
          %s459 = sand.u32 %s138, 1
          %s460 = scalar_lea.sflag [#allocation4], %s459
          %s461 = sand.u32 %s138, 1
          %s462 = smul.addr %s461, 8
          %s463 = scalar_lea.vmem [#allocation5], %s462
          %464 = dma.done %s460, 128
        $region52: #{tpu_custom_call.1} parent=47 // pred_fallthru
          _
      $region48: #{tpu_custom_call.1} parent=5 // pred_fallthru
        _
    $region6: #{tpu_custom_call.1} parent=1 // loop_footer
      %s20 = sadd.s32 1, %s16
    $region7: #{tpu_custom_call.1} parent=1 // loop_footer_branch
      %15 = sbr.rel target = $region3
    $region8: #{tpu_custom_call.1} parent=1 // loop_exit
      _
    %465 = vsyncpa [#allocation3], 1
    %s466 = scalar_lea.sflag [#allocation3], 1
    %467 = vsyncpa %s466, 1
    %468 = vsyncpa [#allocation4], 1
    %s469 = scalar_lea.sflag [#allocation4], 1
    %470 = vsyncpa %s469, 1

// kernel: tpu_custom_call.1
$region0: #{tpu_custom_call.1}
  #allocation0 [shape = 'u32[]', space=smem, size = 0x4, offset = 0x4, fixed_abs, tag = 'smem constant byte address 0x4 - core index']
  #allocation1 [shape = 'u32[144,128]{1,0:T(1,128)}', space=vmem, size = 0x12000, scoped, tag = 'internal scratch']
  %s0 = inlined_call_operand.vmem [shape: f32[16,128], index: 0, kind: input, shape index: {}]
  %s1 = inlined_call_operand.vmem [shape: f32[32,16], index: 1, kind: input, shape index: {}]
  %s2 = inlined_call_operand.hbm [shape: f32[16,32], index: 2, kind: input, shape index: {}]
  %s3 = inlined_call_operand.vmem [shape: f32[32,128], index: 3, kind: input, shape index: {}]
  %s4 = inlined_call_operand.hbm [shape: f32[16,128], index: 4, kind: output, shape index: {}]
  %s5 = sld [smem:[#allocation0]]
  $region53: #{tpu_custom_call.1} parent=0
    _
  %s7 = ssub.s32 1, %s5
  %s8 = scalar_select 0, %s7, %s5
  $region1: #{tpu_custom_call.1} parent=0
    #allocation2 [shape = 'u8[8192]{0}', space=vmem, size = 0x2000, scoped, tag = 'input window, operand 2']
    #allocation3 [shape = 's32[2]{0}', space=sflag, size = 0x8, scoped, tag = 'scoped memory for tpu_custom_call.1']
    #allocation4 [shape = 's32[2]{0}', space=sflag, size = 0x8, scoped, tag = 'scoped memory for tpu_custom_call.1']
    #allocation5 [shape = 'u8[8192]{0}', space=vmem, size = 0x2000, scoped, tag = 'output window, operand 0']
    %9 = vsyncpa [#allocation3], 0
    %s10 = scalar_lea.sflag [#allocation3], 1
    %11 = vsyncpa %s10, 0
    %12 = vsyncpa [#allocation4], 0
    %s13 = scalar_lea.sflag [#allocation4], 1
    %14 = vsyncpa %s13, 0
    loop: start=0, step=1, limit=4
    $region2: #{tpu_custom_call.1} parent=1 // loop_pre_header
      _
    $region3: #{tpu_custom_call.1} parent=1 // loop_header
      %s16 = sphi 0, %s20
      %p17 = scmp.ge.s32.totalorder %s16, 4
      %s23 = sphi 0, %s35
      %s24 = sphi 0, %s31
      %s25 = sphi 0, %s23
      %s26 = sphi 0, %s24
      %s27 = sphi 0, %s25
      %s28 = sphi 0, %s26
      %s38 = sphi 0, %s40
      %s41 = sphi 0, %s38
      %s42 = sphi 0, %s41
      %s58 = sphi 0, %s42
      %s62 = sphi 0, %s62
      %s64 = sphi 0, %s62
      %s65 = sphi 0, %s64
      %s79 = sphi 0, %s65
      %s85 = sphi 0, %s87
      %s88 = sphi 0, %s85
      %s89 = sphi 0, %s88
      %s105 = sphi 0, %s89
      %s109 = sphi 0, %s109
      %s111 = sphi 0, %s109
      %s112 = sphi 0, %s111
      %s126 = sphi 0, %s112
      %s134 = sphi 0, %s136
      %s137 = sphi 0, %s134
      %s138 = sphi 0, %s137
      %s154 = sphi 0, %s138
    $region4: #{tpu_custom_call.1} parent=1 // loop_header_branch
      %19 = sbr.rel (%p17) target = $region8
    $region5: #{tpu_custom_call.1} parent=1 // loop_body
      %s21 = ssub.s32 %s16, 1
      %s22 = ssub.s32 %s16, 2
      %s29 = sadd.s32 1, %s24
      %p30 = scmp.ge.s32.totalorder %s29, 1
      %s31 = scalar_select %p30, 0, %s29
      %s32 = sadd.s32 1, %s23
      %s33 = scalar_select %p30, %s32, %s23
      %p34 = scmp.ge.s32.totalorder %s33, 2
      %s35 = scalar_select %p34, 0, %s33
      %s36 = ssub.s32 %s24, %s31
      %p37 = scmp.eq.s32.totalorder %s36, 0
      %s39 = sadd.s32 %s38, 1
      %s40 = scalar_select %p37, %s38, %s39
      %p43 = pneg %p37
      %p44 = scmp.eq.s32.totalorder %s16, 1
      %p45 = por %p43, %p44
      %p46 = scmp.ne.s32.totalorder %s38, %s41
      %p47 = scmp.eq.s32.totalorder %s16, 0
      %p48 = por %p46, %p47
      %p49 = scmp.ne.s32.totalorder %s38, %s41
      %p50 = scmp.eq.s32.totalorder %s21, 1
      %p51 = por %p49, %p50
      %p52 = scmp.ne.s32.totalorder %s41, %s42
      %p53 = scmp.eq.s32.totalorder %s21, 0
      %p54 = por %p52, %p53
      %p55 = scmp.ne.s32.totalorder %s41, %s42
      %p56 = scmp.eq.s32.totalorder %s22, 1
      %p57 = por %p55, %p56
      %p59 = scmp.ne.s32.totalorder %s42, %s58
      %p60 = scmp.eq.s32.totalorder %s22, 0
      %p61 = por %p59, %p60
      %s63 = sadd.s32 %s62, 1
      %p66 = scmp.eq.s32.totalorder %s16, 1
      %p67 = scmp.ne.s32.totalorder %s62, %s64
      %p68 = scmp.eq.s32.totalorder %s16, 0
      %p69 = por %p67, %p68
      %p70 = scmp.ne.s32.totalorder %s62, %s64
      %p71 = scmp.eq.s32.totalorder %s21, 1
      %p72 = por %p70, %p71
      %p73 = scmp.ne.s32.totalorder %s64, %s65
      %p74 = scmp.eq.s32.totalorder %s21, 0
      %p75 = por %p73, %p74
      %p76 = scmp.ne.s32.totalorder %s64, %s65
      %p77 = scmp.eq.s32.totalorder %s22, 1
      %p78 = por %p76, %p77
      %p80 = scmp.ne.s32.totalorder %s65, %s79
      %p81 = scmp.eq.s32.totalorder %s22, 0
      %p82 = por %p80, %p81
      %s83 = ssub.s32 %s23, %s35
      %p84 = scmp.eq.s32.totalorder %s83, 0
      %s86 = sadd.s32 %s85, 1
      %s87 = scalar_select %p84, %s85, %s86
      %p90 = pneg %p84
      %p91 = scmp.eq.s32.totalorder %s16, 1
      %p92 = por %p90, %p91
      %p93 = scmp.ne.s32.totalorder %s85, %s88
      %p94 = scmp.eq.s32.totalorder %s16, 0
      %p95 = por %p93, %p94
      %p96 = scmp.ne.s32.totalorder %s85, %s88
      %p97 = scmp.eq.s32.totalorder %s21, 1
      %p98 = por %p96, %p97
      %p99 = scmp.ne.s32.totalorder %s88, %s89
      %p100 = scmp.eq.s32.totalorder %s21, 0
      %p101 = por %p99, %p100
      %p102 = scmp.ne.s32.totalorder %s88, %s89
      %p103 = scmp.eq.s32.totalorder %s22, 1
      %p104 = por %p102, %p103
      %p106 = scmp.ne.s32.totalorder %s89, %s105
      %p107 = scmp.eq.s32.totalorder %s22, 0
      %p108 = por %p106, %p107
      %s110 = sadd.s32 %s109, 1
      %p113 = scmp.eq.s32.totalorder %s16, 1
      %p114 = scmp.ne.s32.totalorder %s109, %s111
      %p115 = scmp.eq.s32.totalorder %s16, 0
      %p116 = por %p114, %p115
      %p117 = scmp.ne.s32.totalorder %s109, %s111
      %p118 = scmp.eq.s32.totalorder %s21, 1
      %p119 = por %p117, %p118
      %p120 = scmp.ne.s32.totalorder %s111, %s112
      %p121 = scmp.eq.s32.totalorder %s21, 0
      %p122 = por %p120, %p121
      %p123 = scmp.ne.s32.totalorder %s111, %s112
      %p124 = scmp.eq.s32.totalorder %s22, 1
      %p125 = por %p123, %p124
      %p127 = scmp.ne.s32.totalorder %s112, %s126
      %p128 = scmp.eq.s32.totalorder %s22, 0
      %p129 = por %p127, %p128
      %s130 = ssub.s32 %s23, %s35
      %s131 = ssub.s32 %s24, %s31
      %s132 = sor.u32 %s130, %s131
      %p133 = scmp.eq.s32.totalorder %s132, 0
      %s135 = sadd.s32 %s134, 1
      %s136 = scalar_select %p133, %s134, %s135
      %p139 = pneg %p133
      %p140 = scmp.eq.s32.totalorder %s16, 1
      %p141 = por %p139, %p140
      %p142 = scmp.ne.s32.totalorder %s134, %s137
      %p143 = scmp.eq.s32.totalorder %s16, 0
      %p144 = por %p142, %p143
      %p145 = scmp.ne.s32.totalorder %s134, %s137
      %p146 = scmp.eq.s32.totalorder %s21, 1
      %p147 = por %p145, %p146
      %p148 = scmp.ne.s32.totalorder %s137, %s138
      %p149 = scmp.eq.s32.totalorder %s21, 0
      %p150 = por %p148, %p149
      %p151 = scmp.ne.s32.totalorder %s137, %s138
      %p152 = scmp.eq.s32.totalorder %s22, 1
      %p153 = por %p151, %p152
      %p155 = scmp.ne.s32.totalorder %s138, %s154
      %p156 = scmp.eq.s32.totalorder %s22, 0
      %p157 = por %p155, %p156
      %p158 = scmp.le.s32.totalorder 1, %s16
      %p159 = scmp.lt.s32.totalorder %s16, 3
      %p160 = pnand %p158, %p159
      %p161 = pneg %p160
      // Predicated region
      $region9: #{tpu_custom_call.1} parent=5 // pred_check
        _
      $region10: #{tpu_custom_call.1} parent=5 // pred_check_branch
        %163 = sbr.rel (%p160) target = $region12
      $region11: #{tpu_custom_call.1} parent=5 // pred_region
        %s164 = ssub.s32 %s16, 1
        // Predicated region
        $region13: #{tpu_custom_call.1} parent=11 // pred_check
          %p165 = pneg %p54
        $region14: #{tpu_custom_call.1} parent=11 // pred_check_branch
          %167 = sbr.rel (%p165) target = $region16
        $region15: #{tpu_custom_call.1} parent=11 // pred_region
          %p168 = scmp.lt.s32.totalorder %s26, 0
          %s169 = scalar_select %p168, %s26, 0
          %s170 = smul.addr %s169, 8
          %s171 = scalar_lea.vmem %s0, %s170
        $region16: #{tpu_custom_call.1} parent=11 // pred_fallthru
          _
        // Predicated region
        $region17: #{tpu_custom_call.1} parent=11 // pred_check
          %p172 = pneg %p75
        $region18: #{tpu_custom_call.1} parent=11 // pred_check_branch
          %174 = sbr.rel (%p172) target = $region20
        $region19: #{tpu_custom_call.1} parent=11 // pred_region
          _
        $region20: #{tpu_custom_call.1} parent=11 // pred_fallthru
          _
        // Predicated region
        $region21: #{tpu_custom_call.1} parent=11 // pred_check
          %p175 = pneg %p122
        $region22: #{tpu_custom_call.1} parent=11 // pred_check_branch
          %177 = sbr.rel (%p175) target = $region24
        $region23: #{tpu_custom_call.1} parent=11 // pred_region
          _
        $region24: #{tpu_custom_call.1} parent=11 // pred_fallthru
          _
      $region12: #{tpu_custom_call.1} parent=5 // pred_fallthru
        _
      %p178 = scmp.lt.s32.totalorder %s16, 2
      // Predicated region
      $region25: #{tpu_custom_call.1} parent=5 // pred_check
        %p179 = pneg %p178
      $region26: #{tpu_custom_call.1} parent=5 // pred_check_branch
        %181 = sbr.rel (%p179) target = $region28
      $region27: #{tpu_custom_call.1} parent=5 // pred_region
        // Predicated region
        $region29: #{tpu_custom_call.1} parent=27 // pred_check
          %p182 = pneg %p95
        $region30: #{tpu_custom_call.1} parent=27 // pred_check_branch
          %184 = sbr.rel (%p182) target = $region32
        $region31: #{tpu_custom_call.1} parent=27 // pred_region
          %s185 = sand.u32 %s85, 1
          %s186 = scalar_lea.sflag [#allocation3], %s185
          %s187 = sand.u32 %s85, 1
          %s188 = smul.addr %s187, 8
          %s189 = scalar_lea.vmem [#allocation2], %s188
          %s191 = ssub.s32 128, 128
          %192 = vsyncadd %s186, %s191
          %s193 = smul.addr %s23, 128
          %s194 = scalar_lea.hbm %s2, %s193
          %s196 = sshll.u32 %s189, 4
          %s197 = int_to_ptr.vmem [resolvable:$true] %s196
          %199 = dma.hbm_to_vmem [thread:$0]  %s194, 128, %s197, %s186
        $region32: #{tpu_custom_call.1} parent=27 // pred_fallthru
          _
      $region28: #{tpu_custom_call.1} parent=5 // pred_fallthru
        _
      %p200 = scmp.le.s32.totalorder 1, %s16
      %p201 = scmp.lt.s32.totalorder %s16, 3
      %p202 = pnand %p200, %p201
      %p203 = pneg %p202
      // Predicated region
      $region33: #{tpu_custom_call.1} parent=5 // pred_check
        _
      $region34: #{tpu_custom_call.1} parent=5 // pred_check_branch
        %205 = sbr.rel (%p202) target = $region36
      $region35: #{tpu_custom_call.1} parent=5 // pred_region
        %s206 = ssub.s32 %s16, 1
        %s207 = sand.u32 %s88, 1
        %s208 = scalar_lea.sflag [#allocation3], %s207
        %s209 = sand.u32 %s88, 1
        %s210 = smul.addr %s209, 8
        %s211 = scalar_lea.vmem [#allocation2], %s210
        // Predicated region
        $region37: #{tpu_custom_call.1} parent=35 // pred_check
          %p212 = pneg %p101
        $region38: #{tpu_custom_call.1} parent=35 // pred_check_branch
          %214 = sbr.rel (%p212) target = $region40
        $region39: #{tpu_custom_call.1} parent=35 // pred_region
          %215 = dma.done %s208, 128
        $region40: #{tpu_custom_call.1} parent=35 // pred_fallthru
          _
        %p216 = scmp.lt.s32.totalorder %s26, 0
        %s217 = scalar_select %p216, %s26, 0
        %s218 = smul.addr %s217, 8
        %s219 = scalar_lea.vmem %s0, %s218
        %p220 = pneg %p54
        %p221 = pneg %p51
        %p222 = pneg %p75
        %p223 = pneg %p72
        %s224 = sand.u32 %s88, 1
        %s225 = scalar_lea.sflag [#allocation3], %s224
        %s226 = sand.u32 %s88, 1
        %s227 = smul.addr %s226, 8
        %s228 = scalar_lea.vmem [#allocation2], %s227
        %p229 = pneg %p101
        %p230 = pneg %p98
        %p231 = pneg %p122
        %p232 = pneg %p119
        %p233 = pneg %p150
        %p234 = pneg %p147
        %s235 = sand.u32 %s137, 1
        %s236 = scalar_lea.sflag [#allocation4], %s235
        %s237 = sand.u32 %s137, 1
        %s238 = smul.addr %s237, 8
        %s239 = scalar_lea.vmem [#allocation5], %s238
        %p240 = scmp.lt.s32.totalorder %s26, 0
        %s241 = scalar_select %p240, %s26, 0
        %s242 = smul.addr %s241, 8
        %s243 = scalar_lea.vmem %s0, %s242
        %v244 = vld [vmem:[%s1] sm:$0xff]
        %v245 = vld [vmem:[%s1 + $0x8] sm:$0xff]
        %v246 = vld [vmem:[%s1 + $0x10] sm:$0xff]
        %v247 = vld [vmem:[%s1 + $0x18] sm:$0xff]
        %v248 = vld [vmem:[%s243] sm:$0xff]
        %v249 = vld [vmem:[%s243 + $0x8] sm:$0xff]
        %vm250 = vcmask 130048
        %v252 = vsel %vm250, %v244, 0
        %v255 = vsel %vm250, %v245, 0
        %v258 = vsel %vm250, %v246, 0
        %v261 = vsel %vm250, %v247, 0
        %263 = vmatprep.subr.mxu0 0.0
        %264 = vmatpush1.msra.mxu0 %v248
        %265 = vmatprep.subr.mxu0 0.0
        %266 = vmatpush1.msra.mxu0 %v249
        %267 = vmatprep.subr.mxu0 0.0
        %268 = vmatpush1.msra.mxu0 0.0
        %269 = vmatprep.subr.mxu0 0.0
        %270 = vmatpush1.msra.mxu0 0.0
        %271 = vmatprep.subr.mxu0 0.0
        %272 = vmatpush1.msra.mxu0 0.0
        %273 = vmatprep.subr.mxu0 0.0
        %274 = vmatpush1.msra.mxu0 0.0
        %275 = vmatprep.subr.mxu0 0.0
        %276 = vmatpush1.msra.mxu0 0.0
        %277 = vmatprep.subr.mxu0 0.0
        %278 = vmatpush1.msra.mxu0 0.0
        %279 = vmatprep.subr.mxu0 0.0
        %280 = vmatpush1.msra.mxu0 0.0
        %281 = vmatprep.subr.mxu0 0.0
        %282 = vmatpush1.msra.mxu0 0.0
        %283 = vmatprep.subr.mxu0 0.0
        %284 = vmatpush1.msra.mxu0 0.0
        %285 = vmatprep.subr.mxu0 0.0
        %286 = vmatpush1.msra.mxu0 0.0
        %287 = vmatprep.subr.mxu0 0.0
        %288 = vmatpush1.msra.mxu0 0.0
        %289 = vmatprep.subr.mxu0 0.0
        %290 = vmatpush1.msra.mxu0 0.0
        %291 = vmatprep.subr.mxu0 0.0
        %292 = vmatpush1.msra.mxu0 0.0
        %293 = vmatprep.subr.mxu0 0.0
        %294 = vmatpush1.msra.mxu0 0.0
        %295 = vmatprep.subr.mxu0 0.0
        %296 = vmatpush1.msra.mxu0 0.0
        %297 = vmatprep.subr.mxu0 0.0
        %298 = vmatpush1.msra.mxu0 0.0
        %299 = vmatprep.subr.mxu0 0.0
        %300 = vmatpush1.msra.mxu0 0.0
        %301 = vmatprep.subr.mxu0 0.0
        %302 = vmatpush1.msra.mxu0 0.0
        %303 = vmatprep.subr.mxu0 0.0
        %304 = vmatpush1.msra.mxu0 0.0
        %305 = vmatprep.subr.mxu0 0.0
        %306 = vmatpush1.msra.mxu0 0.0
        %307 = vmatprep.subr.mxu0 0.0
        %308 = vmatpush1.msra.mxu0 0.0
        %309 = vmatprep.subr.mxu0 0.0
        %310 = vmatpush1.msra.mxu0 0.0
        %311 = vmatprep.subr.mxu0 0.0
        %312 = vmatpush1.msra.mxu0 0.0
        %313 = vmatprep.subr.mxu0 0.0
        %314 = vmatpush1.msra.mxu0 0.0
        %315 = vmatprep.subr.mxu0 0.0
        %316 = vmatpush1.msra.mxu0 0.0
        %317 = vmatprep.subr.mxu0 0.0
        %318 = vmatpush1.msra.mxu0 0.0
        %319 = vmatprep.subr.mxu0 0.0
        %320 = vmatpush1.msra.mxu0 0.0
        %321 = vmatprep.subr.mxu0 0.0
        %322 = vmatpush1.msra.mxu0 0.0
        %323 = vmatprep.subr.mxu0 0.0
        %324 = vmatpush1.msra.mxu0 0.0
        %325 = vmatprep.subr.mxu0 0.0
        %326 = vmatpush1.msra.mxu0 0.0
        %327 = vmatprep.mubr.f32.mxu0 0.0
        %328 = vmatmul.mubr.f32.gmra.mrb[0].mxu0 %v252
        %v329 = vpop.f32.mrb[0].mxu0
        %v330 = vadd.f32 0.0, %v329
        %v331 = vpop.f32.mrb[0].mxu0
        %332 = vmatprep.mubr.f32.mxu0 0.0
        %333 = vmatmul.mubr.f32.gmra.mrb[0].mxu0 %v255
        %v334 = vpop.f32.mrb[0].mxu0
        %v335 = vadd.f32 0.0, %v334
        %v336 = vpop.f32.mrb[0].mxu0
        %337 = vmatprep.mubr.f32.mxu0 0.0
        %338 = vmatmul.mubr.f32.gmra.mrb[0].mxu0 %v258
        %v339 = vpop.f32.mrb[0].mxu0
        %v340 = vadd.f32 0.0, %v339
        %v341 = vpop.f32.mrb[0].mxu0
        %342 = vmatprep.mubr.f32.mxu0 0.0
        %343 = vmatmul.mubr.f32.gmra.mrb[0].mxu0 %v261
        %v344 = vpop.f32.mrb[0].mxu0
        %v345 = vadd.f32 0.0, %v344
        %v346 = vpop.f32.mrb[0].mxu0
        %347 = vdwg.mxu0
        %v348 = vld [vmem:[%s3] sm:$0xff]
        %v349 = vld [vmem:[%s3 + $0x8] sm:$0xff]
        %v350 = vld [vmem:[%s3 + $0x10] sm:$0xff]
        %v351 = vld [vmem:[%s3 + $0x18] sm:$0xff]
        %v352 = vmul.f32 %v330, %v348
        %v353 = vmul.f32 %v335, %v349
        %v354 = vmul.f32 %v340, %v350
        %v355 = vmul.f32 %v345, %v351
        %v356 = vld [vmem:[%s211] sm:$0xff]
        %vm357 = vcmask 261120
        %v359 = vsel %vm357, %v356, 0
        %361 = vmatprep.subr.mxu0 0.0
        %362 = vmatpush1.msra.mxu0 %v352
        %363 = vmatprep.subr.mxu0 0.0
        %364 = vmatpush1.msra.mxu0 %v353
        %365 = vmatprep.subr.mxu0 0.0
        %366 = vmatpush1.msra.mxu0 %v354
        %367 = vmatprep.subr.mxu0 0.0
        %368 = vmatpush1.msra.mxu0 %v355
        %369 = vmatprep.subr.mxu0 0.0
        %370 = vmatpush1.msra.mxu0 0.0
        %371 = vmatprep.subr.mxu0 0.0
        %372 = vmatpush1.msra.mxu0 0.0
        %373 = vmatprep.subr.mxu0 0.0
        %374 = vmatpush1.msra.mxu0 0.0
        %375 = vmatprep.subr.mxu0 0.0
        %376 = vmatpush1.msra.mxu0 0.0
        %377 = vmatprep.subr.mxu0 0.0
        %378 = vmatpush1.msra.mxu0 0.0
        %379 = vmatprep.subr.mxu0 0.0
        %380 = vmatpush1.msra.mxu0 0.0
        %381 = vmatprep.subr.mxu0 0.0
        %382 = vmatpush1.msra.mxu0 0.0
        %383 = vmatprep.subr.mxu0 0.0
        %384 = vmatpush1.msra.mxu0 0.0
        %385 = vmatprep.subr.mxu0 0.0
        %386 = vmatpush1.msra.mxu0 0.0
        %387 = vmatprep.subr.mxu0 0.0
        %388 = vmatpush1.msra.mxu0 0.0
        %389 = vmatprep.subr.mxu0 0.0
        %390 = vmatpush1.msra.mxu0 0.0
        %391 = vmatprep.subr.mxu0 0.0
        %392 = vmatpush1.msra.mxu0 0.0
        %393 = vmatprep.subr.mxu0 0.0
        %394 = vmatpush1.msra.mxu0 0.0
        %395 = vmatprep.subr.mxu0 0.0
        %396 = vmatpush1.msra.mxu0 0.0
        %397 = vmatprep.subr.mxu0 0.0
        %398 = vmatpush1.msra.mxu0 0.0
        %399 = vmatprep.subr.mxu0 0.0
        %400 = vmatpush1.msra.mxu0 0.0
        %401 = vmatprep.subr.mxu0 0.0
        %402 = vmatpush1.msra.mxu0 0.0
        %403 = vmatprep.subr.mxu0 0.0
        %404 = vmatpush1.msra.mxu0 0.0
        %405 = vmatprep.subr.mxu0 0.0
        %406 = vmatpush1.msra.mxu0 0.0
        %407 = vmatprep.subr.mxu0 0.0
        %408 = vmatpush1.msra.mxu0 0.0
        %409 = vmatprep.subr.mxu0 0.0
        %410 = vmatpush1.msra.mxu0 0.0
        %411 = vmatprep.subr.mxu0 0.0
        %412 = vmatpush1.msra.mxu0 0.0
        %413 = vmatprep.subr.mxu0 0.0
        %414 = vmatpush1.msra.mxu0 0.0
        %415 = vmatprep.subr.mxu0 0.0
        %416 = vmatpush1.msra.mxu0 0.0
        %417 = vmatprep.subr.mxu0 0.0
        %418 = vmatpush1.msra.mxu0 0.0
        %419 = vmatprep.subr.mxu0 0.0
        %420 = vmatpush1.msra.mxu0 0.0
        %421 = vmatprep.subr.mxu0 0.0
        %422 = vmatpush1.msra.mxu0 0.0
        %423 = vmatprep.subr.mxu0 0.0
        %424 = vmatpush1.msra.mxu0 0.0
        %425 = vmatprep.mubr.f32.mxu0 0.0
        %426 = vmatmul.mubr.f32.gmra.mrb[0].mxu0 %v359
        %v427 = vpop.f32.mrb[0].mxu0
        %v428 = vadd.f32 0.0, %v427
        %v429 = vpop.f32.mrb[0].mxu0
        %430 = vdwg.mxu0
        %431 = vst [vmem:[%s239] sm:$0xff] %v428
        %s432 = sand.u32 %s137, 1
        %s433 = scalar_lea.sflag [#allocation4], %s432
        %s434 = sand.u32 %s137, 1
        %s435 = smul.addr %s434, 8
        %s436 = scalar_lea.vmem [#allocation5], %s435
        // Predicated region
        $region41: #{tpu_custom_call.1} parent=35 // pred_check
          %p437 = pneg %p147
        $region42: #{tpu_custom_call.1} parent=35 // pred_check_branch
          %439 = sbr.rel (%p437) target = $region44
        $region43: #{tpu_custom_call.1} parent=35 // pred_region
          %s441 = ssub.s32 128, 128
          %442 = vsyncadd %s433, %s441
          %s443 = sadd.s32 %s26, %s25
          %s444 = smul.addr %s443, 128
          %s445 = scalar_lea.hbm %s4, %s444
          %s447 = sshll.u32 %s436, 4
          %s448 = int_to_ptr.vmem [resolvable:$true] %s447
          %450 = dma.vmem_to_hbm [thread:$0]  %s448, 128, %s445, %s433
        $region44: #{tpu_custom_call.1} parent=35 // pred_fallthru
          _
      $region36: #{tpu_custom_call.1} parent=5 // pred_fallthru
        _
      %p451 = scmp.le.s32.totalorder 2, %s16
      // Predicated region
      $region45: #{tpu_custom_call.1} parent=5 // pred_check
        %p452 = pneg %p451
      $region46: #{tpu_custom_call.1} parent=5 // pred_check_branch
        %454 = sbr.rel (%p452) target = $region48
      $region47: #{tpu_custom_call.1} parent=5 // pred_region
        %s455 = ssub.s32 %s16, 2
        // Predicated region
        $region49: #{tpu_custom_call.1} parent=47 // pred_check
          %p456 = pneg %p153
        $region50: #{tpu_custom_call.1} parent=47 // pred_check_branch
          %458 = sbr.rel (%p456) target = $region52
        $region51: #{tpu_custom_call.1} parent=47 // pred_region
          %s459 = sand.u32 %s138, 1
          %s460 = scalar_lea.sflag [#allocation4], %s459
          %s461 = sand.u32 %s138, 1
          %s462 = smul.addr %s461, 8
          %s463 = scalar_lea.vmem [#allocation5], %s462
          %464 = dma.done %s460, 128
        $region52: #{tpu_custom_call.1} parent=47 // pred_fallthru
          _
      $region48: #{tpu_custom_call.1} parent=5 // pred_fallthru
        _
    $region6: #{tpu_custom_call.1} parent=1 // loop_footer
      %s20 = sadd.s32 1, %s16
    $region7: #{tpu_custom_call.1} parent=1 // loop_footer_branch
      %15 = sbr.rel target = $region3
    $region8: #{tpu_custom_call.1} parent=1 // loop_exit
      _
    %465 = vsyncpa [#allocation3], 1
    %s466 = scalar_lea.sflag [#allocation3], 1
    %467 = vsyncpa %s466, 1
    %468 = vsyncpa [#allocation4], 1
    %s469 = scalar_lea.sflag [#allocation4], 1
    %470 = vsyncpa %s469, 1

</llo_original>
